<compile_context>
chip_gen: v5e
topology: v5e:2x2
jax: 0.10.0
libtpu: 0.0.40
codegen_flags: <defaults>
</compile_context>

<pallas_src>
import functools

import jax
import jax.numpy as jnp
from jax.experimental import pallas as pl
from jax.experimental.pallas import tpu as pltpu

PAD_A = 8          # padded action width (>= action_dim); small -> small HBM writeback
_NEG_BIG = -1e30   # padded-action bias -> exp() underflows to exactly 0


def policy_net_kernel(x_ref, w1_ref, b1_ref, w2_ref, b2_ref,
                      w3_ref, b3_ref, w4_ref, b4_ref, o_ref):
    """One batch tile: 3x (Linear+ReLU) -> Linear -> softmax over padded action lanes."""
    x = x_ref[...]

    h = jnp.dot(x, w1_ref[...], preferred_element_type=jnp.float32) + b1_ref[...]
    h = jnp.maximum(h, 0.0)
    h = jnp.dot(h, w2_ref[...], preferred_element_type=jnp.float32) + b2_ref[...]
    h = jnp.maximum(h, 0.0)
    h = jnp.dot(h, w3_ref[...], preferred_element_type=jnp.float32) + b3_ref[...]
    h = jnp.maximum(h, 0.0)

    # Final layer is pre-padded to PAD_A output columns (padded bias = -1e30),
    # so the scores tile and the output store cover the full (small) last dim.
    s = jnp.dot(h, w4_ref[...], preferred_element_type=jnp.float32) + b4_ref[...]

    # Softmax over the action axis (padded columns contribute exp(.) == 0).
    m = jnp.max(s, axis=-1, keepdims=True)
    e = jnp.exp(s - m)
    denom = jnp.sum(e, axis=-1, keepdims=True)
    o_ref[...] = e / denom  # exact divide: denom is (TB,1), accuracy matters here


def _round_up(n, m):
    return (n + m - 1) // m * m


def _resident_spec(arr):
    """Whole-array block with a constant index_map: fetched once, VMEM-resident
    across all batch-grid iterations. Built per-arg (no late-binding lambda)."""
    nd = arr.ndim
    return pl.BlockSpec(arr.shape, lambda i, _nd=nd: (0,) * _nd)


def pad_final_layer(params, pad_width=PAD_A):
    """Hoisted out of the per-call path: pad the last Linear to pad_width columns once."""
    hidden, A = params["w4"].shape
    assert A <= pad_width
    w4p = jnp.zeros((hidden, pad_width), jnp.float32).at[:, :A].set(params["w4"])
    b4p = jnp.full((1, pad_width), _NEG_BIG, jnp.float32).at[:, :A].set(params["b4"])
    out = dict(params)
    out["w4"] = w4p
    out["b4"] = b4p
    return out


@functools.partial(jax.jit, static_argnames=("action_dim", "block_batch"))
def policy_network_forward(x, padded_params, action_dim, *, block_batch=1024):
    """x: (B, state_dim) float32. padded_params: dict with w4/b4 already padded to PAD_A."""
    B, state_dim = x.shape
    pad_a = padded_params["w4"].shape[1]

    # Batch tile: multiple of 8 (full sublanes), capped by block_batch.
    B8 = _round_up(B, 8)
    TB = min(_round_up(block_batch, 8), B8)
    # v7x has 2 TensorCores: keep >= 2 grid steps when the batch allows it so the
    # "parallel" batch axis actually feeds both cores (harmless on v5e/v6e).
    if B8 // TB < 2 and B8 >= 16:
        TB = _round_up(pl.cdiv(B8, 2), 8)
    num_tiles = pl.cdiv(B8, TB)
    B_pad = num_tiles * TB

    # Only materialize a padded copy of x when actually needed.
    if B_pad != B:
        x_p = jnp.zeros((B_pad, state_dim), jnp.float32).at[:B].set(x)
    else:
        x_p = x

    resident = (padded_params["w1"], padded_params["b1"],
                padded_params["w2"], padded_params["b2"],
                padded_params["w3"], padded_params["b3"],
                padded_params["w4"], padded_params["b4"])

    out = pl.pallas_call(
        policy_net_kernel,
        out_shape=jax.ShapeDtypeStruct((B_pad, pad_a), jnp.float32),
        grid=(num_tiles,),
        in_specs=[pl.BlockSpec((TB, state_dim), lambda i: (i, 0))]
                 + [_resident_spec(w) for w in resident],
        out_specs=pl.BlockSpec((TB, pad_a), lambda i: (i, 0)),
        compiler_params=pltpu.CompilerParams(
            dimension_semantics=("parallel",)),  # shard batch tiles across TCs on v7x
    )(x_p, *resident)

    return out[:B, :action_dim]


def init_params(key, state_dim, action_dim, hidden=10):
    """Deterministic synthetic init (uniform, PyTorch-Linear-like fan_in scaling)."""
    dims = [(state_dim, hidden), (hidden, hidden), (hidden, hidden), (hidden, action_dim)]
    params = {}
    for i, (fin, fout) in enumerate(dims, start=1):
        key, kw, kb = jax.random.split(key, 3)
        bound = 1.0 / jnp.sqrt(jnp.float32(fin))
        params[f"w{i}"] = jax.random.uniform(kw, (fin, fout), jnp.float32, -bound, bound)
        params[f"b{i}"] = jax.random.uniform(kb, (1, fout), jnp.float32, -bound, bound)
    return params


def reference_forward(x, params):
    h = x
    for i in (1, 2, 3):
        h = jnp.maximum(h @ params[f"w{i}"] + params[f"b{i}"], 0.0)
    s = h @ params["w4"] + params["b4"]
    return jax.nn.softmax(s, axis=1)


if __name__ == "__main__":
    key = jax.random.PRNGKey(0)
    state_dim, action_dim = 4, 3

    key, kp = jax.random.split(key)
    params = init_params(kp, state_dim, action_dim)
    padded_params = pad_final_layer(params)  # built once, outside the hot path

    # Primary check: the module's natural small shape.
    key, kx = jax.random.split(key)
    x = jax.random.normal(kx, (8, state_dim), jnp.float32)
    out = jax.block_until_ready(policy_network_forward(x, padded_params, action_dim))
    ref = reference_forward(x, params)
    assert out.shape == (8, action_dim)
    assert jnp.allclose(out, ref, atol=1e-4, rtol=1e-4), "mismatch vs JAX reference (B=8)"
    assert jnp.allclose(jnp.sum(out, axis=1), 1.0, atol=1e-4), "softmax rows must sum to 1"

    # Secondary check: batch not a multiple of the tile, exercises padding + multi-tile grid.
    key, kx2 = jax.random.split(key)
    x2 = jax.random.normal(kx2, (37, state_dim), jnp.float32)
    out2 = jax.block_until_ready(
        policy_network_forward(x2, padded_params, action_dim, block_batch=16))
    ref2 = reference_forward(x2, params)
    assert out2.shape == (37, action_dim)
    assert jnp.allclose(out2, ref2, atol=1e-4, rtol=1e-4), "mismatch vs JAX reference (B=37)"
    assert jnp.allclose(jnp.sum(out2, axis=1), 1.0, atol=1e-4), "softmax rows must sum to 1"

    print("KERNEL_OK")
</pallas_src>

<mosaic_0001>
module attributes {stable_mosaic.version = 11 : i64} {
  func.func @policy_net_kernel(%arg0: i32, %arg1: memref<8x4xf32, #tpu.memory_space<vmem>>, %arg2: memref<4x10xf32, #tpu.memory_space<vmem>>, %arg3: memref<1x10xf32, #tpu.memory_space<vmem>>, %arg4: memref<10x10xf32, #tpu.memory_space<vmem>>, %arg5: memref<1x10xf32, #tpu.memory_space<vmem>>, %arg6: memref<10x10xf32, #tpu.memory_space<vmem>>, %arg7: memref<1x10xf32, #tpu.memory_space<vmem>>, %arg8: memref<10x8xf32, #tpu.memory_space<vmem>>, %arg9: memref<1x8xf32, #tpu.memory_space<vmem>>, %arg10: memref<8x8xf32, #tpu.memory_space<vmem>>) attributes {dimension_semantics = [#tpu.dimension_semantics<parallel>], iteration_bounds = array<i64: 1>, scalar_prefetch = 0 : i64, scratch_operands = 0 : i64, tpu.core_type = #tpu.core_type<tc>, window_params = [{transform_indices = @transform_0, window_bounds = array<i64: 8, 4>}, {pipeline_mode = #tpu.pipeline_mode<synchronous>, transform_indices = @transform_1, window_bounds = array<i64: 4, 10>}, {pipeline_mode = #tpu.pipeline_mode<synchronous>, transform_indices = @transform_2, window_bounds = array<i64: 1, 10>}, {pipeline_mode = #tpu.pipeline_mode<synchronous>, transform_indices = @transform_3, window_bounds = array<i64: 10, 10>}, {pipeline_mode = #tpu.pipeline_mode<synchronous>, transform_indices = @transform_4, window_bounds = array<i64: 1, 10>}, {pipeline_mode = #tpu.pipeline_mode<synchronous>, transform_indices = @transform_5, window_bounds = array<i64: 10, 10>}, {pipeline_mode = #tpu.pipeline_mode<synchronous>, transform_indices = @transform_6, window_bounds = array<i64: 1, 10>}, {pipeline_mode = #tpu.pipeline_mode<synchronous>, transform_indices = @transform_7, window_bounds = array<i64: 10, 8>}, {pipeline_mode = #tpu.pipeline_mode<synchronous>, transform_indices = @transform_8, window_bounds = array<i64: 1, 8>}, {transform_indices = @transform_9, window_bounds = array<i64: 8, 8>}]} {
    %c0 = arith.constant 0 : index
    %c0_0 = arith.constant 0 : index
    %0 = vector.load %arg1[%c0, %c0_0] : memref<8x4xf32, #tpu.memory_space<vmem>>, vector<8x4xf32>
    %c0_1 = arith.constant 0 : index
    %c0_2 = arith.constant 0 : index
    %1 = vector.load %arg2[%c0_1, %c0_2] : memref<4x10xf32, #tpu.memory_space<vmem>>, vector<4x10xf32>
    %cst = arith.constant dense<0.000000e+00> : vector<8x10xf32>
    %2 = tpu.matmul %0, %1, %cst {dimension_numbers = #tpu.dot_dimension_numbers<[1], [0], [0], [1], [0, 0, 1, 1], [], []>} : vector<8x4xf32>, vector<4x10xf32>, vector<8x10xf32> -> vector<8x10xf32>
    %c0_3 = arith.constant 0 : index
    %c0_4 = arith.constant 0 : index
    %3 = vector.load %arg3[%c0_3, %c0_4] : memref<1x10xf32, #tpu.memory_space<vmem>>, vector<1x10xf32>
    %4 = vector.broadcast %3 : vector<1x10xf32> to vector<8x10xf32>
    %5 = arith.addf %2, %4 : vector<8x10xf32>
    %cst_5 = arith.constant 0.000000e+00 : f32
    %6 = vector.broadcast %cst_5 : f32 to vector<8x10xf32>
    %7 = arith.maximumf %5, %6 : vector<8x10xf32>
    %c0_6 = arith.constant 0 : index
    %c0_7 = arith.constant 0 : index
    %8 = vector.load %arg4[%c0_6, %c0_7] : memref<10x10xf32, #tpu.memory_space<vmem>>, vector<10x10xf32>
    %cst_8 = arith.constant dense<0.000000e+00> : vector<8x10xf32>
    %9 = tpu.matmul %7, %8, %cst_8 {dimension_numbers = #tpu.dot_dimension_numbers<[1], [0], [0], [1], [0, 0, 1, 1], [], []>} : vector<8x10xf32>, vector<10x10xf32>, vector<8x10xf32> -> vector<8x10xf32>
    %c0_9 = arith.constant 0 : index
    %c0_10 = arith.constant 0 : index
    %10 = vector.load %arg5[%c0_9, %c0_10] : memref<1x10xf32, #tpu.memory_space<vmem>>, vector<1x10xf32>
    %11 = vector.broadcast %10 : vector<1x10xf32> to vector<8x10xf32>
    %12 = arith.addf %9, %11 : vector<8x10xf32>
    %cst_11 = arith.constant 0.000000e+00 : f32
    %13 = vector.broadcast %cst_11 : f32 to vector<8x10xf32>
    %14 = arith.maximumf %12, %13 : vector<8x10xf32>
    %c0_12 = arith.constant 0 : index
    %c0_13 = arith.constant 0 : index
    %15 = vector.load %arg6[%c0_12, %c0_13] : memref<10x10xf32, #tpu.memory_space<vmem>>, vector<10x10xf32>
    %cst_14 = arith.constant dense<0.000000e+00> : vector<8x10xf32>
    %16 = tpu.matmul %14, %15, %cst_14 {dimension_numbers = #tpu.dot_dimension_numbers<[1], [0], [0], [1], [0, 0, 1, 1], [], []>} : vector<8x10xf32>, vector<10x10xf32>, vector<8x10xf32> -> vector<8x10xf32>
    %c0_15 = arith.constant 0 : index
    %c0_16 = arith.constant 0 : index
    %17 = vector.load %arg7[%c0_15, %c0_16] : memref<1x10xf32, #tpu.memory_space<vmem>>, vector<1x10xf32>
    %18 = vector.broadcast %17 : vector<1x10xf32> to vector<8x10xf32>
    %19 = arith.addf %16, %18 : vector<8x10xf32>
    %cst_17 = arith.constant 0.000000e+00 : f32
    %20 = vector.broadcast %cst_17 : f32 to vector<8x10xf32>
    %21 = arith.maximumf %19, %20 : vector<8x10xf32>
    %c0_18 = arith.constant 0 : index
    %c0_19 = arith.constant 0 : index
    %22 = vector.load %arg8[%c0_18, %c0_19] : memref<10x8xf32, #tpu.memory_space<vmem>>, vector<10x8xf32>
    %cst_20 = arith.constant dense<0.000000e+00> : vector<8x8xf32>
    %23 = tpu.matmul %21, %22, %cst_20 {dimension_numbers = #tpu.dot_dimension_numbers<[1], [0], [0], [1], [0, 0, 1, 1], [], []>} : vector<8x10xf32>, vector<10x8xf32>, vector<8x8xf32> -> vector<8x8xf32>
    %c0_21 = arith.constant 0 : index
    %c0_22 = arith.constant 0 : index
    %24 = vector.load %arg9[%c0_21, %c0_22] : memref<1x8xf32, #tpu.memory_space<vmem>>, vector<1x8xf32>
    %25 = vector.broadcast %24 : vector<1x8xf32> to vector<8x8xf32>
    %26 = arith.addf %23, %25 : vector<8x8xf32>
    %cst_23 = arith.constant dense<0xFF800000> : vector<8xf32>
    %27 = vector.multi_reduction <maximumf>, %26, %cst_23 [1] : vector<8x8xf32> to vector<8xf32>
    %28 = vector.shape_cast %27 : vector<8xf32> to vector<8x1xf32>
    %29 = vector.broadcast %28 : vector<8x1xf32> to vector<8x8xf32>
    %30 = arith.subf %26, %29 : vector<8x8xf32>
    %31 = math.exp %30 : vector<8x8xf32>
    %cst_24 = arith.constant dense<0.000000e+00> : vector<8xf32>
    %32 = vector.multi_reduction <add>, %31, %cst_24 [1] : vector<8x8xf32> to vector<8xf32>
    %33 = vector.shape_cast %32 : vector<8xf32> to vector<8x1xf32>
    %34 = vector.broadcast %33 : vector<8x1xf32> to vector<8x8xf32>
    %35 = arith.divf %31, %34 : vector<8x8xf32>
    %c0_25 = arith.constant 0 : index
    %c0_26 = arith.constant 0 : index
    %36 = vector.load %arg10[%c0_25, %c0_26] : memref<8x8xf32, #tpu.memory_space<vmem>>, vector<8x8xf32>
    tpu.vector_store %arg10[%c0_25, %c0_26], %35 {strides = array<i32>} : memref<8x8xf32, #tpu.memory_space<vmem>>, vector<8x8xf32>,
    return
  }
  func.func @transform_0(%arg0: i32) -> (i32, i32) {
    %c0_i32 = arith.constant 0 : i32
    %c0_i32_0 = arith.constant 0 : i32
    return %arg0, %c0_i32 : i32, i32
  }
  func.func @transform_1(%arg0: i32) -> (i32, i32) {
    %c0_i32 = arith.constant 0 : i32
    %c0_i32_0 = arith.constant 0 : i32
    %c0_i32_1 = arith.constant 0 : i32
    return %c0_i32, %c0_i32_0 : i32, i32
  }
  func.func @transform_2(%arg0: i32) -> (i32, i32) {
    %c0_i32 = arith.constant 0 : i32
    %c0_i32_0 = arith.constant 0 : i32
    %c0_i32_1 = arith.constant 0 : i32
    return %c0_i32, %c0_i32_0 : i32, i32
  }
  func.func @transform_3(%arg0: i32) -> (i32, i32) {
    %c0_i32 = arith.constant 0 : i32
    %c0_i32_0 = arith.constant 0 : i32
    %c0_i32_1 = arith.constant 0 : i32
    return %c0_i32, %c0_i32_0 : i32, i32
  }
  func.func @transform_4(%arg0: i32) -> (i32, i32) {
    %c0_i32 = arith.constant 0 : i32
    %c0_i32_0 = arith.constant 0 : i32
    %c0_i32_1 = arith.constant 0 : i32
    return %c0_i32, %c0_i32_0 : i32, i32
  }
  func.func @transform_5(%arg0: i32) -> (i32, i32) {
    %c0_i32 = arith.constant 0 : i32
    %c0_i32_0 = arith.constant 0 : i32
    %c0_i32_1 = arith.constant 0 : i32
    return %c0_i32, %c0_i32_0 : i32, i32
  }
  func.func @transform_6(%arg0: i32) -> (i32, i32) {
    %c0_i32 = arith.constant 0 : i32
    %c0_i32_0 = arith.constant 0 : i32
    %c0_i32_1 = arith.constant 0 : i32
    return %c0_i32, %c0_i32_0 : i32, i32
  }
  func.func @transform_7(%arg0: i32) -> (i32, i32) {
    %c0_i32 = arith.constant 0 : i32
    %c0_i32_0 = arith.constant 0 : i32
    %c0_i32_1 = arith.constant 0 : i32
    return %c0_i32, %c0_i32_0 : i32, i32
  }
  func.func @transform_8(%arg0: i32) -> (i32, i32) {
    %c0_i32 = arith.constant 0 : i32
    %c0_i32_0 = arith.constant 0 : i32
    %c0_i32_1 = arith.constant 0 : i32
    return %c0_i32, %c0_i32_0 : i32, i32
  }
  func.func @transform_9(%arg0: i32) -> (i32, i32) {
    %c0_i32 = arith.constant 0 : i32
    %c0_i32_0 = arith.constant 0 : i32
    return %arg0, %c0_i32 : i32, i32
  }
}

</mosaic_0001>

<llo_original>
// kernel: policy_network_forward.1
$region0: #{policy_network_forward.1}
  #allocation0 [shape = 'u32[]', space=smem, size = 0x4, offset = 0x4, fixed_abs, tag = 'smem constant byte address 0x4 - core index']
  #allocation1 [shape = 'u32[72,128]{1,0:T(1,128)}', space=vmem, size = 0x9000, scoped, tag = 'internal scratch']
  %s0 = inlined_call_operand.vmem [shape: f32[8,4], index: 0, kind: input, shape index: {}]
  %s1 = inlined_call_operand.vmem [shape: f32[4,10], index: 1, kind: input, shape index: {}]
  %s2 = inlined_call_operand.vmem [shape: f32[1,10], index: 2, kind: input, shape index: {}]
  %s3 = inlined_call_operand.vmem [shape: f32[10,10], index: 3, kind: input, shape index: {}]
  %s4 = inlined_call_operand.vmem [shape: f32[1,10], index: 4, kind: input, shape index: {}]
  %s5 = inlined_call_operand.hbm [shape: f32[10,10], index: 5, kind: input, shape index: {}]
  %s6 = inlined_call_operand.vmem [shape: f32[1,10], index: 6, kind: input, shape index: {}]
  %s7 = inlined_call_operand.vmem [shape: f32[10,8], index: 7, kind: input, shape index: {}]
  %s8 = inlined_call_operand.vmem [shape: f32[1,8], index: 8, kind: input, shape index: {}]
  %s9 = inlined_call_operand.vmem [shape: f32[8,8], index: 9, kind: output, shape index: {}]
  %s10 = sld [smem:[#allocation0]]
  $region50: #{policy_network_forward.1} parent=0
    _
  %s12 = ssub.s32 1, %s10
  %s13 = scalar_select 0, %s12, %s10
  $region1: #{policy_network_forward.1} parent=0
    #allocation2 [shape = 'u8[8192]{0}', space=vmem, size = 0x2000, scoped, tag = 'input window, operand 5, single buffered']
    #allocation3 [shape = 's32[1]{0}', space=sflag, size = 0x4, scoped, tag = 'scoped memory for policy_network_forward.1']
    %14 = vsyncpa [#allocation3], 0
    // Predicated region
    $region2: #{policy_network_forward.1} parent=1 // pred_check
      _
    $region3: #{policy_network_forward.1} parent=1 // pred_check_branch
      %16 = sbr.rel (0) target = $region5
    $region4: #{policy_network_forward.1} parent=1 // pred_region
      _
    $region5: #{policy_network_forward.1} parent=1 // pred_fallthru
      _
    // Predicated region
    $region6: #{policy_network_forward.1} parent=1 // pred_check
      _
    $region7: #{policy_network_forward.1} parent=1 // pred_check_branch
      %18 = sbr.rel (0) target = $region9
    $region8: #{policy_network_forward.1} parent=1 // pred_region
      _
    $region9: #{policy_network_forward.1} parent=1 // pred_fallthru
      _
    // Predicated region
    $region10: #{policy_network_forward.1} parent=1 // pred_check
      _
    $region11: #{policy_network_forward.1} parent=1 // pred_check_branch
      %20 = sbr.rel (0) target = $region13
    $region12: #{policy_network_forward.1} parent=1 // pred_region
      _
    $region13: #{policy_network_forward.1} parent=1 // pred_fallthru
      _
    // Predicated region
    $region14: #{policy_network_forward.1} parent=1 // pred_check
      _
    $region15: #{policy_network_forward.1} parent=1 // pred_check_branch
      %22 = sbr.rel (0) target = $region17
    $region16: #{policy_network_forward.1} parent=1 // pred_region
      _
    $region17: #{policy_network_forward.1} parent=1 // pred_fallthru
      _
    // Predicated region
    $region18: #{policy_network_forward.1} parent=1 // pred_check
      _
    $region19: #{policy_network_forward.1} parent=1 // pred_check_branch
      %24 = sbr.rel (0) target = $region21
    $region20: #{policy_network_forward.1} parent=1 // pred_region
      _
    $region21: #{policy_network_forward.1} parent=1 // pred_fallthru
      _
    // Predicated region
    $region22: #{policy_network_forward.1} parent=1 // pred_check
      _
    $region23: #{policy_network_forward.1} parent=1 // pred_check_branch
      %26 = sbr.rel (0) target = $region25
    $region24: #{policy_network_forward.1} parent=1 // pred_region
      %28 = vsyncadd [#allocation3], 0
      %s29 = sshll.u32 %s5, 4
      %s30 = int_to_ptr.hbm [resolvable:$true] %s29
      %s31 = sshll.u32 [#allocation2], 4
      %s32 = int_to_ptr.vmem [resolvable:$true] %s31
      %37 = dma.hbm_to_vmem [thread:$0]  %s30, 256, %s32, [#allocation3], 128, 128, 8
    $region25: #{policy_network_forward.1} parent=1 // pred_fallthru
      _
    // Predicated region
    $region26: #{policy_network_forward.1} parent=1 // pred_check
      _
    $region27: #{policy_network_forward.1} parent=1 // pred_check_branch
      %39 = sbr.rel (0) target = $region29
    $region28: #{policy_network_forward.1} parent=1 // pred_region
      _
    $region29: #{policy_network_forward.1} parent=1 // pred_fallthru
      _
    // Predicated region
    $region30: #{policy_network_forward.1} parent=1 // pred_check
      _
    $region31: #{policy_network_forward.1} parent=1 // pred_check_branch
      %41 = sbr.rel (0) target = $region33
    $region32: #{policy_network_forward.1} parent=1 // pred_region
      _
    $region33: #{policy_network_forward.1} parent=1 // pred_fallthru
      _
    // Predicated region
    $region34: #{policy_network_forward.1} parent=1 // pred_check
      _
    $region35: #{policy_network_forward.1} parent=1 // pred_check_branch
      %43 = sbr.rel (0) target = $region37
    $region36: #{policy_network_forward.1} parent=1 // pred_region
      _
    $region37: #{policy_network_forward.1} parent=1 // pred_fallthru
      _
    // Predicated region
    $region38: #{policy_network_forward.1} parent=1 // pred_check
      _
    $region39: #{policy_network_forward.1} parent=1 // pred_check_branch
      %45 = sbr.rel (0) target = $region41
    $region40: #{policy_network_forward.1} parent=1 // pred_region
      %47 = dma.done [#allocation3], 256
    $region41: #{policy_network_forward.1} parent=1 // pred_fallthru
      _
    %v48 = vld [vmem:[%s0] sm:$0xff]
    %v49 = vld [vmem:[%s1] sm:$0xf]
    %v50 = vld [vmem:[%s2] sm:$0x1]
    %v52 = vperm.slane %v50, 0
    %vm54 = vcmask 31744
    %v56 = vsel %vm54, %v48, 0
    %vm58 = vcmask 1043456
    %v60 = vsel %vm58, %v49, 0
    %62 = vmatpush.msra.mxu0 0.0
    %63 = vmatpush.msra.mxu0 0.0
    %64 = vmatpush.msra.mxu0 0.0
    %65 = vmatpush.msra.mxu0 0.0
    %66 = vmatpush.msra.mxu0 0.0
    %67 = vmatpush.msra.mxu0 0.0
    %68 = vmatpush.msra.mxu0 0.0
    %69 = vmatpush.msra.mxu0 0.0
    %70 = vmatpush.msra.mxu0 0.0
    %71 = vmatpush.msra.mxu0 0.0
    %72 = vmatpush.msra.mxu0 0.0
    %73 = vmatpush.msra.mxu0 0.0
    %74 = vmatpush.msra.mxu0 0.0
    %75 = vmatpush.msra.mxu0 0.0
    %76 = vmatpush.msra.mxu0 0.0
    %77 = vmatpush.msra.mxu0 %v60
    %78 = vmatmul.f32.gmra.mxu0 %v56
    %v79 = vpop.f32.mrf.mxu0
    %v80 = vadd.f32 %v52, %v79
    %81 = vdwg.mxu0
    %v82 = vmax.f32 %v80, 0.0
    %v83 = vld [vmem:[%s3] sm:$0xff]
    %v84 = vld [vmem:[%s3 + $0x8] sm:$0x3]
    %v85 = vld [vmem:[%s4] sm:$0x1]
    %v87 = vperm.slane %v85, 0
    %vm89 = vcmask 80896
    %v91 = vsel %vm89, %v82, 0
    %vm93 = vcmask 1041408
    %v95 = vsel %vm93, %v84, 0
    %97 = vmatpush.msra.mxu0 0.0
    %98 = vmatpush.msra.mxu0 0.0
    %99 = vmatpush.msra.mxu0 0.0
    %100 = vmatpush.msra.mxu0 0.0
    %101 = vmatpush.msra.mxu0 0.0
    %102 = vmatpush.msra.mxu0 0.0
    %103 = vmatpush.msra.mxu0 0.0
    %104 = vmatpush.msra.mxu0 0.0
    %105 = vmatpush.msra.mxu0 0.0
    %106 = vmatpush.msra.mxu0 0.0
    %107 = vmatpush.msra.mxu0 0.0
    %108 = vmatpush.msra.mxu0 0.0
    %109 = vmatpush.msra.mxu0 0.0
    %110 = vmatpush.msra.mxu0 0.0
    %111 = vmatpush.msra.mxu0 %v95
    %112 = vmatpush.msra.mxu0 %v83
    %113 = vmatmul.f32.gmra.mxu0 %v91
    %v114 = vpop.f32.mrf.mxu0
    %v115 = vadd.f32 %v87, %v114
    %116 = vdwg.mxu0
    %v117 = vmax.f32 %v115, 0.0
    %v118 = vld [vmem:[#allocation2] sm:$0xff]
    %v119 = vld [vmem:[#allocation2 + $0x8] sm:$0x3]
    %v120 = vld [vmem:[%s6] sm:$0x1]
    %v122 = vperm.slane %v120, 0
    %v125 = vsel %vm89, %v117, 0
    %v128 = vsel %vm93, %v119, 0
    %130 = vmatpush.msra.mxu0 0.0
    %131 = vmatpush.msra.mxu0 0.0
    %132 = vmatpush.msra.mxu0 0.0
    %133 = vmatpush.msra.mxu0 0.0
    %134 = vmatpush.msra.mxu0 0.0
    %135 = vmatpush.msra.mxu0 0.0
    %136 = vmatpush.msra.mxu0 0.0
    %137 = vmatpush.msra.mxu0 0.0
    %138 = vmatpush.msra.mxu0 0.0
    %139 = vmatpush.msra.mxu0 0.0
    %140 = vmatpush.msra.mxu0 0.0
    %141 = vmatpush.msra.mxu0 0.0
    %142 = vmatpush.msra.mxu0 0.0
    %143 = vmatpush.msra.mxu0 0.0
    %144 = vmatpush.msra.mxu0 %v128
    %145 = vmatpush.msra.mxu0 %v118
    %146 = vmatmul.f32.gmra.mxu0 %v125
    %v147 = vpop.f32.mrf.mxu0
    %v148 = vadd.f32 %v122, %v147
    %149 = vdwg.mxu0
    %v150 = vmax.f32 %v148, 0.0
    %v151 = vld [vmem:[%s7] sm:$0xff]
    %v152 = vld [vmem:[%s7 + $0x8] sm:$0x3]
    %v153 = vld [vmem:[%s8] sm:$0x1]
    %v155 = vperm.slane %v153, 0
    %v158 = vsel %vm89, %v150, 0
    %v161 = vsel %vm93, %v152, 0
    %163 = vmatpush.msra.mxu0 0.0
    %164 = vmatpush.msra.mxu0 0.0
    %165 = vmatpush.msra.mxu0 0.0
    %166 = vmatpush.msra.mxu0 0.0
    %167 = vmatpush.msra.mxu0 0.0
    %168 = vmatpush.msra.mxu0 0.0
    %169 = vmatpush.msra.mxu0 0.0
    %170 = vmatpush.msra.mxu0 0.0
    %171 = vmatpush.msra.mxu0 0.0
    %172 = vmatpush.msra.mxu0 0.0
    %173 = vmatpush.msra.mxu0 0.0
    %174 = vmatpush.msra.mxu0 0.0
    %175 = vmatpush.msra.mxu0 0.0
    %176 = vmatpush.msra.mxu0 0.0
    %177 = vmatpush.msra.mxu0 %v161
    %178 = vmatpush.msra.mxu0 %v151
    %179 = vmatmul.f32.gmra.mxu0 %v158
    %v180 = vpop.f32.mrf.mxu0
    %v181 = vadd.f32 %v155, %v180
    %182 = vdwg.mxu0
    %vm183 = vcmask 64512
    %v184 = vsel %vm183, %v181, -inf
    %185 = vmax.xlane.f32.xlu0 %v184
    %v186 = vpop.xlane.xlu0 %185
    %v187 = vsub.f32 %v181, %v186
    %v188 = vmul.f32 %v187, 1.442695
    %v189 = vpow.pop %v188
    %v190 = vsel %vm183, %v189, 0.0
    %191 = vadd.xlane.f32.xlu0 %v190
    %v192 = vpop.xlane.xlu0 %191
    %v193 = vrcp.pop %v192
    %v194 = vmul.f32 %v192, %v193
    %v195 = vsub.f32 1.0, %v194
    %v196 = vmul.f32 %v193, %v195
    %v197 = vadd.f32 %v193, %v196
    %vm198 = vweird.f32 %v192
    %vm199 = vweird.f32 %v193
    %vm200 = vmor %vm198, %vm199
    %v201 = vsel %vm200, %v193, %v197
    %v202 = vand.u32 2147483647, %v192
    %vm203 = vcmp.eq.f32.partialorder %v202, 8.507059e+37
    %v204 = vand.u32 %v192, 2147483648
    %v205 = vor.u32 1.1754944e-38, %v204
    %v206 = vsel %vm203, %v205, %v201
    %v207 = vmul.f32 %v189, %v206
    %208 = vst.msk [vmem:[%s9] sm:$0xff] %vm183, %v207
    // Predicated region
    $region42: #{policy_network_forward.1} parent=1 // pred_check
      _
    $region43: #{policy_network_forward.1} parent=1 // pred_check_branch
      %210 = sbr.rel (0) target = $region45
    $region44: #{policy_network_forward.1} parent=1 // pred_region
      _
    $region45: #{policy_network_forward.1} parent=1 // pred_fallthru
      _
    // Predicated region
    $region46: #{policy_network_forward.1} parent=1 // pred_check
      _
    $region47: #{policy_network_forward.1} parent=1 // pred_check_branch
      %212 = sbr.rel (0) target = $region49
    $region48: #{policy_network_forward.1} parent=1 // pred_region
      _
    $region49: #{policy_network_forward.1} parent=1 // pred_fallthru
      _
    %213 = vsyncpa [#allocation3], 1

</llo_original>
